<compile_context>
chip_gen: v6e
topology: v6e:2x2x1
jax: 0.10.0
libtpu: 0.0.40
codegen_flags: <defaults>
</compile_context>

<pallas_src>
import math

import jax
import jax.numpy as jnp
from jax.experimental import pallas as pl
from jax.experimental.pallas import tpu as pltpu

BF16 = jnp.bfloat16


# ---------------------------------------------------------------------------
# Fused two-layer kernel
# ---------------------------------------------------------------------------
def fused_sage_kernel(h0_ref, efa_ref, c_ref, inv_ref,
                      wm_h1_ref, wm_e1_ref, bm1_ref, wa_h1_ref, wa_n1_ref, ba1_ref,
                      wm_h2_ref, wm_e2_ref, bm2_ref, wa_h2_ref, wa_n2_ref, ba2_ref,
                      out_ref):
    def mxu(a, b_ref):
        # bf16 operands, f32 accumulation
        return jnp.dot(a, b_ref[...], preferred_element_type=jnp.float32)

    h0 = h0_ref[...]                              # (N, Din)  bf16
    efa = efa_ref[...]                            # (N, De)   bf16: mean edge feat per dst node
    c = c_ref[...]                                # (N, N)    bf16: edge counts u->v (exact ints)
    inv = inv_ref[...]                            # (N, 1)    f32: 1/indeg (0 for isolated nodes)
    has_in = (inv > 0.0).astype(jnp.float32)      # (N, 1)    gate for the message bias

    def layer(h, wm_h, wm_e, bm, wa_h, wa_n, ba):
        # message + mean aggregation, reassociated:
        #   mean_e[Wm_h h_src + Wm_e e + bm] = inv*(C @ (H@Wm_h)) + EF_agg@Wm_e + bm
        z = mxu(h, wm_h)                                          # (N, Dmid) f32
        agg = inv * mxu(c, z.astype(BF16))                        # (N, Dmid) f32
        h_neigh = agg + mxu(efa, wm_e) + has_in * bm[...]         # (N, Dmid) f32
        # apply: relu(W_apply(cat[h_self, h_neigh])), split-weight form
        out = mxu(h, wa_h) + mxu(h_neigh.astype(BF16), wa_n) + ba[...]
        return jnp.maximum(out, 0.0)                              # ReLU (f32, VPU)

    h1 = layer(h0, wm_h1_ref, wm_e1_ref, bm1_ref, wa_h1_ref, wa_n1_ref, ba1_ref)
    # TODO(synk): nn.Dropout between layers is identity in eval mode; training-mode
    #             RNG dropout not implemented.
    h2 = layer(h1.astype(BF16), wm_h2_ref, wm_e2_ref, bm2_ref,
               wa_h2_ref, wa_n2_ref, ba2_ref)
    out_ref[...] = h2                                             # (N, 128) lane-dense f32


# ---------------------------------------------------------------------------
# Graph preprocessing (no dense E x N matrices anywhere)
# ---------------------------------------------------------------------------
def build_graph(src, dst, efeats, n_nodes):
    e = src.shape[0]
    src_oh = jax.nn.one_hot(src, n_nodes, dtype=jnp.float32)                 # (E, N)
    counts = jax.ops.segment_sum(src_oh, dst, num_segments=n_nodes)          # (N, N) C[v,u]
    indeg = jax.ops.segment_sum(jnp.ones((e,), jnp.float32), dst,
                                num_segments=n_nodes)                        # (N,)
    inv = jnp.where(indeg > 0, 1.0 / jnp.maximum(indeg, 1.0), 0.0)           # 0 for isolated
    ef_agg = jax.ops.segment_sum(efeats, dst, num_segments=n_nodes) * inv[:, None]  # (N, De)
    return counts, ef_agg, inv[:, None]


def _pad_cols(w, target):
    return jnp.pad(w, ((0, 0), (0, target - w.shape[1])))


def _pad_rows(w, target):
    return jnp.pad(w, ((0, target - w.shape[0]), (0, 0)))


# ---------------------------------------------------------------------------
# Wrapper: SAGE.forward (two SAGELayers, ReLU each, mean-over-edges aggregation)
# ---------------------------------------------------------------------------
def sage_forward(nfeats, efeats, src, dst, params_l1, params_l2):
    # squeeze(1) semantics for 3-D (N, 1, D) inputs
    h0 = nfeats.reshape(nfeats.shape[0], nfeats.shape[-1]) if nfeats.ndim == 3 else nfeats
    ef = efeats.reshape(efeats.shape[0], efeats.shape[-1]) if efeats.ndim == 3 else efeats
    n = h0.shape[0]

    c, ef_agg, inv = build_graph(src, dst, ef, n)

    wm_h1, wm_e1, bm1, wa_h1, wa_n1, ba1 = params_l1
    wm_h2, wm_e2, bm2, wa_h2, wa_n2, ba2 = params_l2
    ndim_out = wa_n2.shape[1]
    pad = max(128, ndim_out)                       # lane-dense output width

    # zero-pad layer-2 output columns to `pad`; padded columns stay exactly 0.
    wm_h2p, wm_e2p, bm2p = _pad_cols(wm_h2, pad), _pad_cols(wm_e2, pad), _pad_cols(bm2, pad)
    wa_h2p, ba2p = _pad_cols(wa_h2, pad), _pad_cols(ba2, pad)
    wa_n2p = _pad_cols(_pad_rows(wa_n2, pad), pad)

    bf = lambda x: x.astype(BF16)
    args = (bf(h0), bf(ef_agg), bf(c), inv,
            bf(wm_h1), bf(wm_e1), bm1, bf(wa_h1), bf(wa_n1), ba1,
            bf(wm_h2p), bf(wm_e2p), bm2p, bf(wa_h2p), bf(wa_n2p), ba2p)

    vmem = pl.BlockSpec(memory_space=pltpu.MemorySpace.VMEM)
    out = pl.pallas_call(
        fused_sage_kernel,
        out_shape=jax.ShapeDtypeStruct((n, pad), jnp.float32),
        in_specs=[vmem] * len(args),
        out_specs=vmem,
    )(*args)
    return out[:, :ndim_out]


# ---------------------------------------------------------------------------
# Parameter init (matches nn.Linear default init, weights stored as W^T)
# ---------------------------------------------------------------------------
def init_linear(key, fan_in, fan_out):
    kw, kb = jax.random.split(key)
    bound = 1.0 / math.sqrt(fan_in)
    w_t = jax.random.uniform(kw, (fan_in, fan_out), jnp.float32, -bound, bound)
    b = jax.random.uniform(kb, (1, fan_out), jnp.float32, -bound, bound)
    return w_t, b


def make_layer_params(key, ndim_in, edim, ndim_out):
    k1, k2 = jax.random.split(key)
    wm, bm = init_linear(k1, ndim_in + edim, ndim_out)       # W_msg, split at concat boundary
    wm_h, wm_e = wm[:ndim_in], wm[ndim_in:]
    wa, ba = init_linear(k2, ndim_in + ndim_out, ndim_out)   # W_apply, split at concat boundary
    wa_h, wa_n = wa[:ndim_in], wa[ndim_in:]
    return (wm_h, wm_e, bm, wa_h, wa_n, ba)


# ---------------------------------------------------------------------------
# Pure-JAX f32 reference (mirrors the PyTorch/DGL semantics, eval mode)
# ---------------------------------------------------------------------------
def sage_layer_ref(h, ef, src, dst, params):
    wm_h, wm_e, bm, wa_h, wa_n, ba = params
    n, e = h.shape[0], src.shape[0]
    msg = h[src] @ wm_h + ef @ wm_e + bm                                     # (E, Dmid)
    msg_sum = jax.ops.segment_sum(msg, dst, num_segments=n)
    indeg = jax.ops.segment_sum(jnp.ones((e,), jnp.float32), dst, num_segments=n)
    h_neigh = jnp.where(indeg[:, None] > 0,
                        msg_sum / jnp.maximum(indeg, 1.0)[:, None], 0.0)
    return jnp.maximum(h @ wa_h + h_neigh @ wa_n + ba, 0.0)


if __name__ == "__main__":
    N_NODES, N_EDGES = 8, 32
    NDIM_IN, EDIM, NDIM_OUT, HIDDEN = 16, 8, 32, 128

    key = jax.random.PRNGKey(0)
    k_n, k_e, k_src, k_dst, k_p1, k_p2 = jax.random.split(key, 6)

    nfeats = jax.random.normal(k_n, (N_NODES, 1, NDIM_IN), jnp.float32)   # (N, 1, Din)
    efeats = jax.random.normal(k_e, (N_EDGES, 1, EDIM), jnp.float32)      # (E, 1, De)
    src = jax.random.randint(k_src, (N_EDGES,), 0, N_NODES)
    dst = jax.random.randint(k_dst, (N_EDGES,), 0, N_NODES)

    params_l1 = make_layer_params(k_p1, NDIM_IN, EDIM, HIDDEN)    # SAGELayer(ndim_in, edim, 128)
    params_l2 = make_layer_params(k_p2, HIDDEN, EDIM, NDIM_OUT)   # SAGELayer(128, edim, ndim_out)

    out = sage_forward(nfeats, efeats, src, dst, params_l1, params_l2)
    out = jax.block_until_ready(out)
    assert out.shape == (N_NODES, NDIM_OUT), out.shape

    # correctness vs. f32 reference (bf16 MXU operands -> generous tolerance)
    h_ref = nfeats.reshape(N_NODES, NDIM_IN)
    e_ref = efeats.reshape(N_EDGES, EDIM)
    h_ref = sage_layer_ref(h_ref, e_ref, src, dst, params_l1)
    h_ref = sage_layer_ref(h_ref, e_ref, src, dst, params_l2)
    assert jnp.allclose(out, h_ref, atol=1e-1, rtol=1e-1), float(jnp.max(jnp.abs(out - h_ref)))

    print("KERNEL_OK")
</pallas_src>

<mosaic_0001>
module attributes {stable_mosaic.version = 11 : i64} {
  func.func @fused_sage_kernel(%arg0: memref<8x16xbf16, #tpu.memory_space<vmem>>, %arg1: memref<8x8xbf16, #tpu.memory_space<vmem>>, %arg2: memref<8x8xbf16, #tpu.memory_space<vmem>>, %arg3: memref<8x1xf32, #tpu.memory_space<vmem>>, %arg4: memref<16x128xbf16, #tpu.memory_space<vmem>>, %arg5: memref<8x128xbf16, #tpu.memory_space<vmem>>, %arg6: memref<1x128xf32, #tpu.memory_space<vmem>>, %arg7: memref<16x128xbf16, #tpu.memory_space<vmem>>, %arg8: memref<128x128xbf16, #tpu.memory_space<vmem>>, %arg9: memref<1x128xf32, #tpu.memory_space<vmem>>, %arg10: memref<128x128xbf16, #tpu.memory_space<vmem>>, %arg11: memref<8x128xbf16, #tpu.memory_space<vmem>>, %arg12: memref<1x128xf32, #tpu.memory_space<vmem>>, %arg13: memref<128x128xbf16, #tpu.memory_space<vmem>>, %arg14: memref<128x128xbf16, #tpu.memory_space<vmem>>, %arg15: memref<1x128xf32, #tpu.memory_space<vmem>>, %arg16: memref<8x128xf32, #tpu.memory_space<vmem>>) attributes {dimension_semantics = [], scalar_prefetch = 0 : i64, scratch_operands = 0 : i64, tpu.core_type = #tpu.core_type<tc>} {
    %c0 = arith.constant 0 : index
    %c0_0 = arith.constant 0 : index
    %0 = vector.load %arg0[%c0, %c0_0] : memref<8x16xbf16, #tpu.memory_space<vmem>>, vector<8x16xbf16>
    %c0_1 = arith.constant 0 : index
    %c0_2 = arith.constant 0 : index
    %1 = vector.load %arg1[%c0_1, %c0_2] : memref<8x8xbf16, #tpu.memory_space<vmem>>, vector<8x8xbf16>
    %c0_3 = arith.constant 0 : index
    %c0_4 = arith.constant 0 : index
    %2 = vector.load %arg2[%c0_3, %c0_4] : memref<8x8xbf16, #tpu.memory_space<vmem>>, vector<8x8xbf16>
    %c0_5 = arith.constant 0 : index
    %c0_6 = arith.constant 0 : index
    %3 = vector.load %arg3[%c0_5, %c0_6] : memref<8x1xf32, #tpu.memory_space<vmem>>, vector<8x1xf32>
    %cst = arith.constant 0.000000e+00 : f32
    %4 = vector.broadcast %cst : f32 to vector<8x1xf32>
    %5 = arith.cmpf ogt, %3, %4 : vector<8x1xf32>
    %6 = arith.extui %5 : vector<8x1xi1> to vector<8x1xi32>
    %7 = arith.sitofp %6 : vector<8x1xi32> to vector<8x1xf32>
    %c0_7 = arith.constant 0 : index
    %c0_8 = arith.constant 0 : index
    %8 = vector.load %arg4[%c0_7, %c0_8] : memref<16x128xbf16, #tpu.memory_space<vmem>>, vector<16x128xbf16>
    %cst_9 = arith.constant dense<0.000000e+00> : vector<8x128xf32>
    %9 = tpu.matmul %0, %8, %cst_9 {dimension_numbers = #tpu.dot_dimension_numbers<[1], [0], [0], [1], [0, 0, 1, 1], [], []>} : vector<8x16xbf16>, vector<16x128xbf16>, vector<8x128xf32> -> vector<8x128xf32>
    %10 = arith.truncf %9 : vector<8x128xf32> to vector<8x128xbf16>
    %cst_10 = arith.constant dense<0.000000e+00> : vector<8x128xf32>
    %11 = tpu.matmul %2, %10, %cst_10 {dimension_numbers = #tpu.dot_dimension_numbers<[1], [0], [0], [1], [0, 0, 1, 1], [], []>} : vector<8x8xbf16>, vector<8x128xbf16>, vector<8x128xf32> -> vector<8x128xf32>
    %12 = vector.broadcast %3 : vector<8x1xf32> to vector<8x128xf32>
    %13 = arith.mulf %12, %11 : vector<8x128xf32>
    %c0_11 = arith.constant 0 : index
    %c0_12 = arith.constant 0 : index
    %14 = vector.load %arg5[%c0_11, %c0_12] : memref<8x128xbf16, #tpu.memory_space<vmem>>, vector<8x128xbf16>
    %cst_13 = arith.constant dense<0.000000e+00> : vector<8x128xf32>
    %15 = tpu.matmul %1, %14, %cst_13 {dimension_numbers = #tpu.dot_dimension_numbers<[1], [0], [0], [1], [0, 0, 1, 1], [], []>} : vector<8x8xbf16>, vector<8x128xbf16>, vector<8x128xf32> -> vector<8x128xf32>
    %16 = arith.addf %13, %15 : vector<8x128xf32>
    %c0_14 = arith.constant 0 : index
    %c0_15 = arith.constant 0 : index
    %17 = vector.load %arg6[%c0_14, %c0_15] : memref<1x128xf32, #tpu.memory_space<vmem>>, vector<1x128xf32>
    %18 = vector.broadcast %7 : vector<8x1xf32> to vector<8x128xf32>
    %19 = vector.broadcast %17 : vector<1x128xf32> to vector<8x128xf32>
    %20 = arith.mulf %18, %19 : vector<8x128xf32>
    %21 = arith.addf %16, %20 : vector<8x128xf32>
    %c0_16 = arith.constant 0 : index
    %c0_17 = arith.constant 0 : index
    %22 = vector.load %arg7[%c0_16, %c0_17] : memref<16x128xbf16, #tpu.memory_space<vmem>>, vector<16x128xbf16>
    %cst_18 = arith.constant dense<0.000000e+00> : vector<8x128xf32>
    %23 = tpu.matmul %0, %22, %cst_18 {dimension_numbers = #tpu.dot_dimension_numbers<[1], [0], [0], [1], [0, 0, 1, 1], [], []>} : vector<8x16xbf16>, vector<16x128xbf16>, vector<8x128xf32> -> vector<8x128xf32>
    %24 = arith.truncf %21 : vector<8x128xf32> to vector<8x128xbf16>
    %c0_19 = arith.constant 0 : index
    %c0_20 = arith.constant 0 : index
    %25 = vector.load %arg8[%c0_19, %c0_20] : memref<128x128xbf16, #tpu.memory_space<vmem>>, vector<128x128xbf16>
    %cst_21 = arith.constant dense<0.000000e+00> : vector<8x128xf32>
    %26 = tpu.matmul %24, %25, %cst_21 {dimension_numbers = #tpu.dot_dimension_numbers<[1], [0], [0], [1], [0, 0, 1, 1], [], []>} : vector<8x128xbf16>, vector<128x128xbf16>, vector<8x128xf32> -> vector<8x128xf32>
    %27 = arith.addf %23, %26 : vector<8x128xf32>
    %c0_22 = arith.constant 0 : index
    %c0_23 = arith.constant 0 : index
    %28 = vector.load %arg9[%c0_22, %c0_23] : memref<1x128xf32, #tpu.memory_space<vmem>>, vector<1x128xf32>
    %29 = vector.broadcast %28 : vector<1x128xf32> to vector<8x128xf32>
    %30 = arith.addf %27, %29 : vector<8x128xf32>
    %cst_24 = arith.constant 0.000000e+00 : f32
    %31 = vector.broadcast %cst_24 : f32 to vector<8x128xf32>
    %32 = arith.maximumf %30, %31 : vector<8x128xf32>
    %33 = arith.truncf %32 : vector<8x128xf32> to vector<8x128xbf16>
    %c0_25 = arith.constant 0 : index
    %c0_26 = arith.constant 0 : index
    %34 = vector.load %arg10[%c0_25, %c0_26] : memref<128x128xbf16, #tpu.memory_space<vmem>>, vector<128x128xbf16>
    %cst_27 = arith.constant dense<0.000000e+00> : vector<8x128xf32>
    %35 = tpu.matmul %33, %34, %cst_27 {dimension_numbers = #tpu.dot_dimension_numbers<[1], [0], [0], [1], [0, 0, 1, 1], [], []>} : vector<8x128xbf16>, vector<128x128xbf16>, vector<8x128xf32> -> vector<8x128xf32>
    %36 = arith.truncf %35 : vector<8x128xf32> to vector<8x128xbf16>
    %cst_28 = arith.constant dense<0.000000e+00> : vector<8x128xf32>
    %37 = tpu.matmul %2, %36, %cst_28 {dimension_numbers = #tpu.dot_dimension_numbers<[1], [0], [0], [1], [0, 0, 1, 1], [], []>} : vector<8x8xbf16>, vector<8x128xbf16>, vector<8x128xf32> -> vector<8x128xf32>
    %38 = vector.broadcast %3 : vector<8x1xf32> to vector<8x128xf32>
    %39 = arith.mulf %38, %37 : vector<8x128xf32>
    %c0_29 = arith.constant 0 : index
    %c0_30 = arith.constant 0 : index
    %40 = vector.load %arg11[%c0_29, %c0_30] : memref<8x128xbf16, #tpu.memory_space<vmem>>, vector<8x128xbf16>
    %cst_31 = arith.constant dense<0.000000e+00> : vector<8x128xf32>
    %41 = tpu.matmul %1, %40, %cst_31 {dimension_numbers = #tpu.dot_dimension_numbers<[1], [0], [0], [1], [0, 0, 1, 1], [], []>} : vector<8x8xbf16>, vector<8x128xbf16>, vector<8x128xf32> -> vector<8x128xf32>
    %42 = arith.addf %39, %41 : vector<8x128xf32>
    %c0_32 = arith.constant 0 : index
    %c0_33 = arith.constant 0 : index
    %43 = vector.load %arg12[%c0_32, %c0_33] : memref<1x128xf32, #tpu.memory_space<vmem>>, vector<1x128xf32>
    %44 = vector.broadcast %7 : vector<8x1xf32> to vector<8x128xf32>
    %45 = vector.broadcast %43 : vector<1x128xf32> to vector<8x128xf32>
    %46 = arith.mulf %44, %45 : vector<8x128xf32>
    %47 = arith.addf %42, %46 : vector<8x128xf32>
    %c0_34 = arith.constant 0 : index
    %c0_35 = arith.constant 0 : index
    %48 = vector.load %arg13[%c0_34, %c0_35] : memref<128x128xbf16, #tpu.memory_space<vmem>>, vector<128x128xbf16>
    %cst_36 = arith.constant dense<0.000000e+00> : vector<8x128xf32>
    %49 = tpu.matmul %33, %48, %cst_36 {dimension_numbers = #tpu.dot_dimension_numbers<[1], [0], [0], [1], [0, 0, 1, 1], [], []>} : vector<8x128xbf16>, vector<128x128xbf16>, vector<8x128xf32> -> vector<8x128xf32>
    %50 = arith.truncf %47 : vector<8x128xf32> to vector<8x128xbf16>
    %c0_37 = arith.constant 0 : index
    %c0_38 = arith.constant 0 : index
    %51 = vector.load %arg14[%c0_37, %c0_38] : memref<128x128xbf16, #tpu.memory_space<vmem>>, vector<128x128xbf16>
    %cst_39 = arith.constant dense<0.000000e+00> : vector<8x128xf32>
    %52 = tpu.matmul %50, %51, %cst_39 {dimension_numbers = #tpu.dot_dimension_numbers<[1], [0], [0], [1], [0, 0, 1, 1], [], []>} : vector<8x128xbf16>, vector<128x128xbf16>, vector<8x128xf32> -> vector<8x128xf32>
    %53 = arith.addf %49, %52 : vector<8x128xf32>
    %c0_40 = arith.constant 0 : index
    %c0_41 = arith.constant 0 : index
    %54 = vector.load %arg15[%c0_40, %c0_41] : memref<1x128xf32, #tpu.memory_space<vmem>>, vector<1x128xf32>
    %55 = vector.broadcast %54 : vector<1x128xf32> to vector<8x128xf32>
    %56 = arith.addf %53, %55 : vector<8x128xf32>
    %cst_42 = arith.constant 0.000000e+00 : f32
    %57 = vector.broadcast %cst_42 : f32 to vector<8x128xf32>
    %58 = arith.maximumf %56, %57 : vector<8x128xf32>
    %c0_43 = arith.constant 0 : index
    %c0_44 = arith.constant 0 : index
    %59 = vector.load %arg16[%c0_43, %c0_44] : memref<8x128xf32, #tpu.memory_space<vmem>>, vector<8x128xf32>
    tpu.vector_store %arg16[%c0_43, %c0_44], %58 {strides = array<i32>} : memref<8x128xf32, #tpu.memory_space<vmem>>, vector<8x128xf32>,
    return
  }
}

</mosaic_0001>

<llo_original>
// kernel: tpu_custom_call.1
$region0: #{tpu_custom_call.1}
  #allocation0 [shape = 'u32[]', space=smem, size = 0x4, offset = 0x4, fixed_abs, tag = 'smem constant byte address 0x4 - core index']
  #allocation1 [shape = 'u32[144,128]{1,0:T(1,128)}', space=vmem, size = 0x12000, scoped, tag = 'internal scratch']
  %s0 = inlined_call_operand.hbm [shape: bf16[8,16], index: 0, kind: input, shape index: {}]
  %s1 = inlined_call_operand.hbm [shape: bf16[8,8], index: 1, kind: input, shape index: {}]
  %s2 = inlined_call_operand.hbm [shape: bf16[8,8], index: 2, kind: input, shape index: {}]
  %s3 = inlined_call_operand.vmem [shape: f32[8,1], index: 3, kind: input, shape index: {}]
  %s4 = inlined_call_operand.vmem [shape: bf16[16,128], index: 4, kind: input, shape index: {}]
  %s5 = inlined_call_operand.hbm [shape: bf16[8,128], index: 5, kind: input, shape index: {}]
  %s6 = inlined_call_operand.vmem [shape: f32[1,128], index: 6, kind: input, shape index: {}]
  %s7 = inlined_call_operand.vmem [shape: bf16[16,128], index: 7, kind: input, shape index: {}]
  %s8 = inlined_call_operand.hbm [shape: bf16[128,128], index: 8, kind: input, shape index: {}]
  %s9 = inlined_call_operand.vmem [shape: f32[1,128], index: 9, kind: input, shape index: {}]
  %s10 = inlined_call_operand.hbm [shape: bf16[128,128], index: 10, kind: input, shape index: {}]
  %s11 = inlined_call_operand.vmem [shape: bf16[8,128], index: 11, kind: input, shape index: {}]
  %s12 = inlined_call_operand.vmem [shape: f32[1,128], index: 12, kind: input, shape index: {}]
  %s13 = inlined_call_operand.hbm [shape: bf16[128,128], index: 13, kind: input, shape index: {}]
  %s14 = inlined_call_operand.hbm [shape: bf16[128,128], index: 14, kind: input, shape index: {}]
  %s15 = inlined_call_operand.vmem [shape: f32[1,128], index: 15, kind: input, shape index: {}]
  %s16 = inlined_call_operand.hbm [shape: f32[8,128], index: 16, kind: output, shape index: {}]
  %s17 = sld [smem:[#allocation0]]
  $region106: #{tpu_custom_call.1} parent=0
    _
  %s19 = ssub.s32 1, %s17
  %s20 = scalar_select 0, %s19, %s17
  $region1: #{tpu_custom_call.1} parent=0
    #allocation2 [shape = 'u8[2048]{0}', space=vmem, size = 0x800, scoped, tag = 'input window, operand 0, single buffered']
    #allocation3 [shape = 's32[1]{0}', space=sflag, size = 0x4, scoped, tag = 'scoped memory for tpu_custom_call.1']
    #allocation4 [shape = 's32[1]{0}', space=sflag, size = 0x4, scoped, tag = 'scoped memory for tpu_custom_call.1']
    #allocation5 [shape = 'u8[2048]{0}', space=vmem, size = 0x800, scoped, tag = 'input window, operand 1, single buffered']
    #allocation6 [shape = 's32[1]{0}', space=sflag, size = 0x4, scoped, tag = 'scoped memory for tpu_custom_call.1']
    #allocation7 [shape = 'u8[2048]{0}', space=vmem, size = 0x800, scoped, tag = 'input window, operand 2, single buffered']
    #allocation8 [shape = 'u8[2048]{0}', space=vmem, size = 0x800, scoped, tag = 'input window, operand 5, single buffered']
    #allocation9 [shape = 's32[1]{0}', space=sflag, size = 0x4, scoped, tag = 'scoped memory for tpu_custom_call.1']
    #allocation10 [shape = 'u8[32768]{0}', space=vmem, size = 0x8000, scoped, tag = 'input window, operand 8, single buffered']
    #allocation11 [shape = 'u8[32768]{0}', space=vmem, size = 0x8000, scoped, tag = 'input window, operand 10, single buffered']
    #allocation12 [shape = 's32[1]{0}', space=sflag, size = 0x4, scoped, tag = 'scoped memory for tpu_custom_call.1']
    #allocation13 [shape = 'u8[32768]{0}', space=vmem, size = 0x8000, scoped, tag = 'input window, operand 13, single buffered']
    #allocation14 [shape = 'u8[32768]{0}', space=vmem, size = 0x8000, scoped, tag = 'input window, operand 14, single buffered']
    #allocation15 [shape = 's32[1]{0}', space=sflag, size = 0x4, scoped, tag = 'scoped memory for tpu_custom_call.1']
    #allocation16 [shape = 'u8[4096]{0}', space=vmem, size = 0x1000, scoped, tag = 'output window, operand 0, single buffered']
    %21 = vsyncpa [#allocation3], 0
    %22 = vsyncpa [#allocation6], 0
    %23 = vsyncpa [#allocation9], 0
    %24 = vsyncpa [#allocation12], 0
    %25 = vsyncpa [#allocation15], 0
    %26 = vsyncpa [#allocation4], 0
    // Predicated region
    $region2: #{tpu_custom_call.1} parent=1 // pred_check
      _
    $region3: #{tpu_custom_call.1} parent=1 // pred_check_branch
      %28 = sbr.rel (0) target = $region5
    $region4: #{tpu_custom_call.1} parent=1 // pred_region
      %s30 = ssub.s32 64, 64
      %31 = vsyncadd [#allocation3], %s30
      %s33 = sshll.u32 [#allocation2], 4
      %s34 = int_to_ptr.vmem [resolvable:$true] %s33
      %36 = dma.hbm_to_vmem [thread:$0]  %s0, 64, %s34, [#allocation3]
    $region5: #{tpu_custom_call.1} parent=1 // pred_fallthru
      _
    // Predicated region
    $region6: #{tpu_custom_call.1} parent=1 // pred_check
      _
    $region7: #{tpu_custom_call.1} parent=1 // pred_check_branch
      %38 = sbr.rel (0) target = $region9
    $region8: #{tpu_custom_call.1} parent=1 // pred_region
      %s40 = ssub.s32 64, 64
      %41 = vsyncadd [#allocation6], %s40
      %s43 = sshll.u32 [#allocation5], 4
      %s44 = int_to_ptr.vmem [resolvable:$true] %s43
      %46 = dma.hbm_to_vmem [thread:$0]  %s1, 64, %s44, [#allocation6]
    $region9: #{tpu_custom_call.1} parent=1 // pred_fallthru
      _
    // Predicated region
    $region10: #{tpu_custom_call.1} parent=1 // pred_check
      _
    $region11: #{tpu_custom_call.1} parent=1 // pred_check_branch
      %48 = sbr.rel (0) target = $region13
    $region12: #{tpu_custom_call.1} parent=1 // pred_region
      %s50 = ssub.s32 64, 64
      %51 = vsyncadd [#allocation6], %s50
      %s53 = sshll.u32 [#allocation7], 4
      %s54 = int_to_ptr.vmem [resolvable:$true] %s53
      %56 = dma.hbm_to_vmem [thread:$0]  %s2, 64, %s54, [#allocation6]
    $region13: #{tpu_custom_call.1} parent=1 // pred_fallthru
      _
    // Predicated region
    $region14: #{tpu_custom_call.1} parent=1 // pred_check
      _
    $region15: #{tpu_custom_call.1} parent=1 // pred_check_branch
      %58 = sbr.rel (0) target = $region17
    $region16: #{tpu_custom_call.1} parent=1 // pred_region
      _
    $region17: #{tpu_custom_call.1} parent=1 // pred_fallthru
      _
    // Predicated region
    $region18: #{tpu_custom_call.1} parent=1 // pred_check
      _
    $region19: #{tpu_custom_call.1} parent=1 // pred_check_branch
      %60 = sbr.rel (0) target = $region21
    $region20: #{tpu_custom_call.1} parent=1 // pred_region
      _
    $region21: #{tpu_custom_call.1} parent=1 // pred_fallthru
      _
    // Predicated region
    $region22: #{tpu_custom_call.1} parent=1 // pred_check
      _
    $region23: #{tpu_custom_call.1} parent=1 // pred_check_branch
      %62 = sbr.rel (0) target = $region25
    $region24: #{tpu_custom_call.1} parent=1 // pred_region
      %s64 = ssub.s32 64, 64
      %65 = vsyncadd [#allocation9], %s64
      %s67 = sshll.u32 [#allocation8], 4
      %s68 = int_to_ptr.vmem [resolvable:$true] %s67
      %70 = dma.hbm_to_vmem [thread:$0]  %s5, 64, %s68, [#allocation9]
    $region25: #{tpu_custom_call.1} parent=1 // pred_fallthru
      _
    // Predicated region
    $region26: #{tpu_custom_call.1} parent=1 // pred_check
      _
    $region27: #{tpu_custom_call.1} parent=1 // pred_check_branch
      %72 = sbr.rel (0) target = $region29
    $region28: #{tpu_custom_call.1} parent=1 // pred_region
      _
    $region29: #{tpu_custom_call.1} parent=1 // pred_fallthru
      _
    // Predicated region
    $region30: #{tpu_custom_call.1} parent=1 // pred_check
      _
    $region31: #{tpu_custom_call.1} parent=1 // pred_check_branch
      %74 = sbr.rel (0) target = $region33
    $region32: #{tpu_custom_call.1} parent=1 // pred_region
      _
    $region33: #{tpu_custom_call.1} parent=1 // pred_fallthru
      _
    // Predicated region
    $region34: #{tpu_custom_call.1} parent=1 // pred_check
      _
    $region35: #{tpu_custom_call.1} parent=1 // pred_check_branch
      %76 = sbr.rel (0) target = $region37
    $region36: #{tpu_custom_call.1} parent=1 // pred_region
      %s78 = ssub.s32 1024, 1024
      %79 = vsyncadd [#allocation9], %s78
      %s80 = sshll.u32 [#allocation10], 4
      %s81 = int_to_ptr.vmem [resolvable:$true] %s80
      %86 = dma.hbm_to_vmem [thread:$0]  %s8, 1024, %s81, [#allocation9], 64, 64, 4
    $region37: #{tpu_custom_call.1} parent=1 // pred_fallthru
      _
    // Predicated region
    $region38: #{tpu_custom_call.1} parent=1 // pred_check
      _
    $region39: #{tpu_custom_call.1} parent=1 // pred_check_branch
      %88 = sbr.rel (0) target = $region41
    $region40: #{tpu_custom_call.1} parent=1 // pred_region
      _
    $region41: #{tpu_custom_call.1} parent=1 // pred_fallthru
      _
    // Predicated region
    $region42: #{tpu_custom_call.1} parent=1 // pred_check
      _
    $region43: #{tpu_custom_call.1} parent=1 // pred_check_branch
      %90 = sbr.rel (0) target = $region45
    $region44: #{tpu_custom_call.1} parent=1 // pred_region
      %s92 = ssub.s32 1024, 1024
      %93 = vsyncadd [#allocation12], %s92
      %s94 = sshll.u32 [#allocation11], 4
      %s95 = int_to_ptr.vmem [resolvable:$true] %s94
      %100 = dma.hbm_to_vmem [thread:$0]  %s10, 1024, %s95, [#allocation12], 64, 64, 4
    $region45: #{tpu_custom_call.1} parent=1 // pred_fallthru
      _
    // Predicated region
    $region46: #{tpu_custom_call.1} parent=1 // pred_check
      _
    $region47: #{tpu_custom_call.1} parent=1 // pred_check_branch
      %102 = sbr.rel (0) target = $region49
    $region48: #{tpu_custom_call.1} parent=1 // pred_region
      _
    $region49: #{tpu_custom_call.1} parent=1 // pred_fallthru
      _
    // Predicated region
    $region50: #{tpu_custom_call.1} parent=1 // pred_check
      _
    $region51: #{tpu_custom_call.1} parent=1 // pred_check_branch
      %104 = sbr.rel (0) target = $region53
    $region52: #{tpu_custom_call.1} parent=1 // pred_region
      _
    $region53: #{tpu_custom_call.1} parent=1 // pred_fallthru
      _
    // Predicated region
    $region54: #{tpu_custom_call.1} parent=1 // pred_check
      _
    $region55: #{tpu_custom_call.1} parent=1 // pred_check_branch
      %106 = sbr.rel (0) target = $region57
    $region56: #{tpu_custom_call.1} parent=1 // pred_region
      %s108 = ssub.s32 1024, 1024
      %109 = vsyncadd [#allocation12], %s108
      %s110 = sshll.u32 [#allocation13], 4
      %s111 = int_to_ptr.vmem [resolvable:$true] %s110
      %116 = dma.hbm_to_vmem [thread:$0]  %s13, 1024, %s111, [#allocation12], 64, 64, 4
    $region57: #{tpu_custom_call.1} parent=1 // pred_fallthru
      _
    // Predicated region
    $region58: #{tpu_custom_call.1} parent=1 // pred_check
      _
    $region59: #{tpu_custom_call.1} parent=1 // pred_check_branch
      %118 = sbr.rel (0) target = $region61
    $region60: #{tpu_custom_call.1} parent=1 // pred_region
      %s120 = ssub.s32 1024, 1024
      %121 = vsyncadd [#allocation15], %s120
      %s122 = sshll.u32 [#allocation14], 4
      %s123 = int_to_ptr.vmem [resolvable:$true] %s122
      %128 = dma.hbm_to_vmem [thread:$0]  %s14, 1024, %s123, [#allocation15], 64, 64, 4
    $region61: #{tpu_custom_call.1} parent=1 // pred_fallthru
      _
    // Predicated region
    $region62: #{tpu_custom_call.1} parent=1 // pred_check
      _
    $region63: #{tpu_custom_call.1} parent=1 // pred_check_branch
      %130 = sbr.rel (0) target = $region65
    $region64: #{tpu_custom_call.1} parent=1 // pred_region
      _
    $region65: #{tpu_custom_call.1} parent=1 // pred_fallthru
      _
    // Predicated region
    $region66: #{tpu_custom_call.1} parent=1 // pred_check
      _
    $region67: #{tpu_custom_call.1} parent=1 // pred_check_branch
      %132 = sbr.rel (0) target = $region69
    $region68: #{tpu_custom_call.1} parent=1 // pred_region
      %133 = dma.done [#allocation3], 64
    $region69: #{tpu_custom_call.1} parent=1 // pred_fallthru
      _
    // Predicated region
    $region70: #{tpu_custom_call.1} parent=1 // pred_check
      _
    $region71: #{tpu_custom_call.1} parent=1 // pred_check_branch
      %135 = sbr.rel (0) target = $region73
    $region72: #{tpu_custom_call.1} parent=1 // pred_region
      %136 = dma.done [#allocation6], 64
    $region73: #{tpu_custom_call.1} parent=1 // pred_fallthru
      _
    // Predicated region
    $region74: #{tpu_custom_call.1} parent=1 // pred_check
      _
    $region75: #{tpu_custom_call.1} parent=1 // pred_check_branch
      %138 = sbr.rel (0) target = $region77
    $region76: #{tpu_custom_call.1} parent=1 // pred_region
      %139 = dma.done [#allocation6], 64
    $region77: #{tpu_custom_call.1} parent=1 // pred_fallthru
      _
    // Predicated region
    $region78: #{tpu_custom_call.1} parent=1 // pred_check
      _
    $region79: #{tpu_custom_call.1} parent=1 // pred_check_branch
      %141 = sbr.rel (0) target = $region81
    $region80: #{tpu_custom_call.1} parent=1 // pred_region
      %142 = dma.done [#allocation9], 64
    $region81: #{tpu_custom_call.1} parent=1 // pred_fallthru
      _
    // Predicated region
    $region82: #{tpu_custom_call.1} parent=1 // pred_check
      _
    $region83: #{tpu_custom_call.1} parent=1 // pred_check_branch
      %144 = sbr.rel (0) target = $region85
    $region84: #{tpu_custom_call.1} parent=1 // pred_region
      %145 = dma.done [#allocation9], 1024
    $region85: #{tpu_custom_call.1} parent=1 // pred_fallthru
      _
    // Predicated region
    $region86: #{tpu_custom_call.1} parent=1 // pred_check
      _
    $region87: #{tpu_custom_call.1} parent=1 // pred_check_branch
      %147 = sbr.rel (0) target = $region89
    $region88: #{tpu_custom_call.1} parent=1 // pred_region
      %148 = dma.done [#allocation12], 1024
    $region89: #{tpu_custom_call.1} parent=1 // pred_fallthru
      _
    // Predicated region
    $region90: #{tpu_custom_call.1} parent=1 // pred_check
      _
    $region91: #{tpu_custom_call.1} parent=1 // pred_check_branch
      %150 = sbr.rel (0) target = $region93
    $region92: #{tpu_custom_call.1} parent=1 // pred_region
      %151 = dma.done [#allocation12], 1024
    $region93: #{tpu_custom_call.1} parent=1 // pred_fallthru
      _
    // Predicated region
    $region94: #{tpu_custom_call.1} parent=1 // pred_check
      _
    $region95: #{tpu_custom_call.1} parent=1 // pred_check_branch
      %153 = sbr.rel (0) target = $region97
    $region96: #{tpu_custom_call.1} parent=1 // pred_region
      %154 = dma.done [#allocation15], 1024
    $region97: #{tpu_custom_call.1} parent=1 // pred_fallthru
      _
    %v156 = vld [vmem:[#allocation2] sm:$0xf]
    %v157 = vld [vmem:[#allocation5] sm:$0xf]
    %v158 = vld [vmem:[#allocation7] sm:$0xf]
    %v159 = vld [vmem:[%s3] sm:$0xff]
    %vm160 = vcmp.gt.f32.partialorder %v159, 0.0
    %v161 = vsel %vm160, 1, 0
    %v162 = vcvt.s32.f32 %v161
    %v163 = vld [vmem:[%s4] sm:$0xf]
    %v164 = vld [vmem:[%s4 + $0x4] sm:$0xf]
    %v167 = vunpack.c.l.b16 %v163
    %v168 = vunpack.c.l.b16 %v164
    %v169 = vpack.c.b16 %v168, %v167
    %vm171 = vcmask 130048
    %v173 = vsel %vm171, %v156, 0
    %175 = vmatprep.subr.bf16.mxu0 0
    %176 = vmatpush1.bf16.msra.mxu0 0
    %177 = vmatprep.subr.bf16.mxu0 0
    %178 = vmatpush1.bf16.msra.mxu0 0
    %179 = vmatprep.subr.bf16.mxu0 0
    %180 = vmatpush1.bf16.msra.mxu0 0
    %181 = vmatprep.subr.bf16.mxu0 0
    %182 = vmatpush1.bf16.msra.mxu0 0
    %183 = vmatprep.subr.bf16.mxu0 0
    %184 = vmatpush1.bf16.msra.mxu0 0
    %185 = vmatprep.subr.bf16.mxu0 0
    %186 = vmatpush1.bf16.msra.mxu0 0
    %187 = vmatprep.subr.bf16.mxu0 0
    %188 = vmatpush1.bf16.msra.mxu0 0
    %189 = vmatprep.subr.bf16.mxu0 0
    %190 = vmatpush1.bf16.msra.mxu0 %v169
    %191 = vmatprep.subr.bf16.mxu0 0
    %192 = vmatpush2.bf16.msra.mxu0 0
    %193 = vmatprep.subr.bf16.mxu0 0
    %194 = vmatpush2.bf16.msra.mxu0 0
    %195 = vmatprep.subr.bf16.mxu0 0
    %196 = vmatpush2.bf16.msra.mxu0 0
    %197 = vmatprep.subr.bf16.mxu0 0
    %198 = vmatpush2.bf16.msra.mxu0 0
    %199 = vmatprep.subr.bf16.mxu0 0
    %200 = vmatpush2.bf16.msra.mxu0 0
    %201 = vmatprep.subr.bf16.mxu0 0
    %202 = vmatpush2.bf16.msra.mxu0 0
    %203 = vmatprep.subr.bf16.mxu0 0
    %204 = vmatpush2.bf16.msra.mxu0 0
    %205 = vmatprep.subr.bf16.mxu0 0
    %206 = vmatpush2.bf16.msra.mxu0 0
    %207 = vmatprep.mubr.bf16.mxu0 0
    %208 = vmatmul.mubr.bf16.gmra.mxu0 %v173
    %v209 = vpop.f32.mrf.mxu0
    %v210 = vadd.f32 0.0, %v209
    %v211 = vpop.f32.mrf.mxu0
    %v212 = vpop.f32.mrf.mxu0
    %v213 = vpop.f32.mrf.mxu0
    %214 = vdwg.mxu0
    %v215 = vpack.c.bf16 %v210, %v210
    %vm216 = vcmask 64512
    %v218 = vsel %vm216, %v158, 0
    %vm220 = vcmask 1043456
    %v222 = vsel %vm220, %v215, 0
    %224 = vmatprep.subr.bf16.mxu0 0
    %225 = vmatpush1.bf16.msra.mxu0 0
    %226 = vmatprep.subr.bf16.mxu0 0
    %227 = vmatpush1.bf16.msra.mxu0 0
    %228 = vmatprep.subr.bf16.mxu0 0
    %229 = vmatpush1.bf16.msra.mxu0 0
    %230 = vmatprep.subr.bf16.mxu0 0
    %231 = vmatpush1.bf16.msra.mxu0 0
    %232 = vmatprep.subr.bf16.mxu0 0
    %233 = vmatpush1.bf16.msra.mxu0 0
    %234 = vmatprep.subr.bf16.mxu0 0
    %235 = vmatpush1.bf16.msra.mxu0 0
    %236 = vmatprep.subr.bf16.mxu0 0
    %237 = vmatpush1.bf16.msra.mxu0 0
    %238 = vmatprep.subr.bf16.mxu0 0
    %239 = vmatpush1.bf16.msra.mxu0 %v222
    %240 = vmatprep.subr.bf16.mxu0 0
    %241 = vmatpush2.bf16.msra.mxu0 0
    %242 = vmatprep.subr.bf16.mxu0 0
    %243 = vmatpush2.bf16.msra.mxu0 0
    %244 = vmatprep.subr.bf16.mxu0 0
    %245 = vmatpush2.bf16.msra.mxu0 0
    %246 = vmatprep.subr.bf16.mxu0 0
    %247 = vmatpush2.bf16.msra.mxu0 0
    %248 = vmatprep.subr.bf16.mxu0 0
    %249 = vmatpush2.bf16.msra.mxu0 0
    %250 = vmatprep.subr.bf16.mxu0 0
    %251 = vmatpush2.bf16.msra.mxu0 0
    %252 = vmatprep.subr.bf16.mxu0 0
    %253 = vmatpush2.bf16.msra.mxu0 0
    %254 = vmatprep.subr.bf16.mxu0 0
    %255 = vmatpush2.bf16.msra.mxu0 0
    %256 = vmatprep.mubr.bf16.mxu0 0
    %257 = vmatmul.mubr.bf16.gmra.mxu0 %v218
    %v258 = vpop.f32.mrf.mxu0
    %v259 = vadd.f32 0.0, %v258
    %v260 = vpop.f32.mrf.mxu0
    %v261 = vpop.f32.mrf.mxu0
    %v262 = vpop.f32.mrf.mxu0
    %263 = vdwg.mxu0
    %265 = vset.pattern.permute.xlu0 0
    %266 = vperm.xlu0 %265, %v159
    %v267 = vpop.permute.xlu0 %266
    %v269 = vmul.f32 %v267, %v259
    %v270 = vld [vmem:[#allocation8] sm:$0xf]
    %v272 = vsel %vm216, %v157, 0
    %v275 = vsel %vm220, %v270, 0
    %277 = vmatprep.subr.bf16.mxu0 0
    %278 = vmatpush1.bf16.msra.mxu0 0
    %279 = vmatprep.subr.bf16.mxu0 0
    %280 = vmatpush1.bf16.msra.mxu0 0
    %281 = vmatprep.subr.bf16.mxu0 0
    %282 = vmatpush1.bf16.msra.mxu0 0
    %283 = vmatprep.subr.bf16.mxu0 0
    %284 = vmatpush1.bf16.msra.mxu0 0
    %285 = vmatprep.subr.bf16.mxu0 0
    %286 = vmatpush1.bf16.msra.mxu0 0
    %287 = vmatprep.subr.bf16.mxu0 0
    %288 = vmatpush1.bf16.msra.mxu0 0
    %289 = vmatprep.subr.bf16.mxu0 0
    %290 = vmatpush1.bf16.msra.mxu0 0
    %291 = vmatprep.subr.bf16.mxu0 0
    %292 = vmatpush1.bf16.msra.mxu0 %v275
    %293 = vmatprep.subr.bf16.mxu0 0
    %294 = vmatpush2.bf16.msra.mxu0 0
    %295 = vmatprep.subr.bf16.mxu0 0
    %296 = vmatpush2.bf16.msra.mxu0 0
    %297 = vmatprep.subr.bf16.mxu0 0
    %298 = vmatpush2.bf16.msra.mxu0 0
    %299 = vmatprep.subr.bf16.mxu0 0
    %300 = vmatpush2.bf16.msra.mxu0 0
    %301 = vmatprep.subr.bf16.mxu0 0
    %302 = vmatpush2.bf16.msra.mxu0 0
    %303 = vmatprep.subr.bf16.mxu0 0
    %304 = vmatpush2.bf16.msra.mxu0 0
    %305 = vmatprep.subr.bf16.mxu0 0
    %306 = vmatpush2.bf16.msra.mxu0 0
    %307 = vmatprep.subr.bf16.mxu0 0
    %308 = vmatpush2.bf16.msra.mxu0 0
    %309 = vmatprep.mubr.bf16.mxu0 0
    %310 = vmatmul.mubr.bf16.gmra.mxu0 %v272
    %v311 = vpop.f32.mrf.mxu0
    %v312 = vadd.f32 0.0, %v311
    %v313 = vpop.f32.mrf.mxu0
    %v314 = vpop.f32.mrf.mxu0
    %v315 = vpop.f32.mrf.mxu0
    %316 = vdwg.mxu0
    %v317 = vadd.f32 %v269, %v312
    %v318 = vld [vmem:[%s6] sm:$0x1]
    %320 = vset.pattern.permute.xlu0 0
    %321 = vperm.xlu0 %320, %v162
    %v322 = vpop.permute.xlu0 %321
    %v325 = vlaneseq
    %v326 = vshrl.u32 %v325, 7
    %v327 = vsub.s32 0, %v326
    %v328 = vrot.slane %v318, %v327
    %v330 = vmul.f32 %v322, %v328
    %v331 = vadd.f32 %v317, %v330
    %v332 = vld [vmem:[%s7] sm:$0xf]
    %v333 = vld [vmem:[%s7 + $0x4] sm:$0xf]
    %v334 = vpack.c.bf16 %v331, %v331
    %v335 = vld [vmem:[#allocation10] sm:$0xf]
    %v336 = vld [vmem:[#allocation10 + $0x4] sm:$0xf]
    %v337 = vld [vmem:[#allocation10 + $0x8] sm:$0xf]
    %v338 = vld [vmem:[#allocation10 + $0xc] sm:$0xf]
    %v339 = vld [vmem:[#allocation10 + $0x10] sm:$0xf]
    %v340 = vld [vmem:[#allocation10 + $0x14] sm:$0xf]
    %v341 = vld [vmem:[#allocation10 + $0x18] sm:$0xf]
    %v342 = vld [vmem:[#allocation10 + $0x1c] sm:$0xf]
    %v343 = vld [vmem:[#allocation10 + $0x20] sm:$0xf]
    %v344 = vld [vmem:[#allocation10 + $0x24] sm:$0xf]
    %v345 = vld [vmem:[#allocation10 + $0x28] sm:$0xf]
    %v346 = vld [vmem:[#allocation10 + $0x2c] sm:$0xf]
    %v347 = vld [vmem:[#allocation10 + $0x30] sm:$0xf]
    %v348 = vld [vmem:[#allocation10 + $0x34] sm:$0xf]
    %v349 = vld [vmem:[#allocation10 + $0x38] sm:$0xf]
    %v350 = vld [vmem:[#allocation10 + $0x3c] sm:$0xf]
    %v367 = vunpack.c.l.b16 %v335
    %v368 = vunpack.c.l.b16 %v336
    %v369 = vunpack.c.l.b16 %v337
    %v370 = vunpack.c.l.b16 %v338
    %v371 = vunpack.c.l.b16 %v339
    %v372 = vunpack.c.l.b16 %v340
    %v373 = vunpack.c.l.b16 %v341
    %v374 = vunpack.c.l.b16 %v342
    %v375 = vunpack.c.l.b16 %v343
    %v376 = vunpack.c.l.b16 %v344
    %v377 = vunpack.c.l.b16 %v345
    %v378 = vunpack.c.l.b16 %v346
    %v379 = vunpack.c.l.b16 %v347
    %v380 = vunpack.c.l.b16 %v348
    %v381 = vunpack.c.l.b16 %v349
    %v382 = vunpack.c.l.b16 %v350
    %v383 = vpack.c.b16 %v368, %v367
    %v384 = vpack.c.b16 %v370, %v369
    %v385 = vpack.c.b16 %v372, %v371
    %v386 = vpack.c.b16 %v374, %v373
    %v387 = vpack.c.b16 %v376, %v375
    %v388 = vpack.c.b16 %v378, %v377
    %v389 = vpack.c.b16 %v380, %v379
    %v390 = vpack.c.b16 %v382, %v381
    %399 = vmatprep.subr.bf16.mxu0 0
    %400 = vmatpush1.bf16.msra.mxu0 %v390
    %401 = vmatprep.subr.bf16.mxu0 0
    %402 = vmatpush1.bf16.msra.mxu0 %v389
    %403 = vmatprep.subr.bf16.mxu0 0
    %404 = vmatpush1.bf16.msra.mxu0 %v388
    %405 = vmatprep.subr.bf16.mxu0 0
    %406 = vmatpush1.bf16.msra.mxu0 %v387
    %407 = vmatprep.subr.bf16.mxu0 0
    %408 = vmatpush1.bf16.msra.mxu0 %v386
    %409 = vmatprep.subr.bf16.mxu0 0
    %410 = vmatpush1.bf16.msra.mxu0 %v385
    %411 = vmatprep.subr.bf16.mxu0 0
    %412 = vmatpush1.bf16.msra.mxu0 %v384
    %413 = vmatprep.subr.bf16.mxu0 0
    %414 = vmatpush1.bf16.msra.mxu0 %v383
    %415 = vmatprep.subr.bf16.mxu0 0
    %416 = vmatpush2.bf16.msra.mxu0 0
    %417 = vmatprep.subr.bf16.mxu0 0
    %418 = vmatpush2.bf16.msra.mxu0 0
    %419 = vmatprep.subr.bf16.mxu0 0
    %420 = vmatpush2.bf16.msra.mxu0 0
    %421 = vmatprep.subr.bf16.mxu0 0
    %422 = vmatpush2.bf16.msra.mxu0 0
    %423 = vmatprep.subr.bf16.mxu0 0
    %424 = vmatpush2.bf16.msra.mxu0 0
    %425 = vmatprep.subr.bf16.mxu0 0
    %426 = vmatpush2.bf16.msra.mxu0 0
    %427 = vmatprep.subr.bf16.mxu0 0
    %428 = vmatpush2.bf16.msra.mxu0 0
    %429 = vmatprep.subr.bf16.mxu0 0
    %430 = vmatpush2.bf16.msra.mxu0 0
    %431 = vmatprep.mubr.bf16.mxu0 0
    %432 = vmatmul.mubr.bf16.gmra.mxu0 %v334
    %v433 = vpop.f32.mrf.mxu0
    %v434 = vadd.f32 0.0, %v433
    %v435 = vpop.f32.mrf.mxu0
    %v436 = vpop.f32.mrf.mxu0
    %v437 = vpop.f32.mrf.mxu0
    %438 = vdwg.mxu0
    %v441 = vunpack.c.l.b16 %v332
    %v442 = vunpack.c.l.b16 %v333
    %v443 = vpack.c.b16 %v442, %v441
    %445 = vmatprep.subr.bf16.mxu0 0
    %446 = vmatpush1.bf16.msra.mxu0 0
    %447 = vmatprep.subr.bf16.mxu0 0
    %448 = vmatpush1.bf16.msra.mxu0 0
    %449 = vmatprep.subr.bf16.mxu0 0
    %450 = vmatpush1.bf16.msra.mxu0 0
    %451 = vmatprep.subr.bf16.mxu0 0
    %452 = vmatpush1.bf16.msra.mxu0 0
    %453 = vmatprep.subr.bf16.mxu0 0
    %454 = vmatpush1.bf16.msra.mxu0 0
    %455 = vmatprep.subr.bf16.mxu0 0
    %456 = vmatpush1.bf16.msra.mxu0 0
    %457 = vmatprep.subr.bf16.mxu0 0
    %458 = vmatpush1.bf16.msra.mxu0 0
    %459 = vmatprep.subr.bf16.mxu0 0
    %460 = vmatpush1.bf16.msra.mxu0 %v443
    %461 = vmatprep.subr.bf16.mxu0 0
    %462 = vmatpush2.bf16.msra.mxu0 0
    %463 = vmatprep.subr.bf16.mxu0 0
    %464 = vmatpush2.bf16.msra.mxu0 0
    %465 = vmatprep.subr.bf16.mxu0 0
    %466 = vmatpush2.bf16.msra.mxu0 0
    %467 = vmatprep.subr.bf16.mxu0 0
    %468 = vmatpush2.bf16.msra.mxu0 0
    %469 = vmatprep.subr.bf16.mxu0 0
    %470 = vmatpush2.bf16.msra.mxu0 0
    %471 = vmatprep.subr.bf16.mxu0 0
    %472 = vmatpush2.bf16.msra.mxu0 0
    %473 = vmatprep.subr.bf16.mxu0 0
    %474 = vmatpush2.bf16.msra.mxu0 0
    %475 = vmatprep.subr.bf16.mxu0 0
    %476 = vmatpush2.bf16.msra.mxu0 0
    %477 = vmatprep.mubr.bf16.mxu0 0
    %478 = vmatmul.mubr.bf16.gmra.mxu0 %v173
    %v479 = vpop.f32.mrf.mxu0
    %v480 = vadd.f32 %v434, %v479
    %v481 = vpop.f32.mrf.mxu0
    %v482 = vpop.f32.mrf.mxu0
    %v483 = vpop.f32.mrf.mxu0
    %484 = vdwg.mxu0
    %v485 = vld [vmem:[%s9] sm:$0x1]
    %v487 = vlaneseq
    %v488 = vshrl.u32 %v487, 7
    %v489 = vsub.s32 0, %v488
    %v490 = vrot.slane %v485, %v489
    %v492 = vadd.f32 %v480, %v490
    %v493 = vmax.f32 %v492, 0.0
    %v494 = vpack.c.bf16 %v493, %v493
    %v495 = vld [vmem:[#allocation11] sm:$0xf]
    %v496 = vld [vmem:[#allocation11 + $0x4] sm:$0xf]
    %v497 = vld [vmem:[#allocation11 + $0x8] sm:$0xf]
    %v498 = vld [vmem:[#allocation11 + $0xc] sm:$0xf]
    %v499 = vld [vmem:[#allocation11 + $0x10] sm:$0xf]
    %v500 = vld [vmem:[#allocation11 + $0x14] sm:$0xf]
    %v501 = vld [vmem:[#allocation11 + $0x18] sm:$0xf]
    %v502 = vld [vmem:[#allocation11 + $0x1c] sm:$0xf]
    %v503 = vld [vmem:[#allocation11 + $0x20] sm:$0xf]
    %v504 = vld [vmem:[#allocation11 + $0x24] sm:$0xf]
    %v505 = vld [vmem:[#allocation11 + $0x28] sm:$0xf]
    %v506 = vld [vmem:[#allocation11 + $0x2c] sm:$0xf]
    %v507 = vld [vmem:[#allocation11 + $0x30] sm:$0xf]
    %v508 = vld [vmem:[#allocation11 + $0x34] sm:$0xf]
    %v509 = vld [vmem:[#allocation11 + $0x38] sm:$0xf]
    %v510 = vld [vmem:[#allocation11 + $0x3c] sm:$0xf]
    %v527 = vunpack.c.l.b16 %v495
    %v528 = vunpack.c.l.b16 %v496
    %v529 = vunpack.c.l.b16 %v497
    %v530 = vunpack.c.l.b16 %v498
    %v531 = vunpack.c.l.b16 %v499
    %v532 = vunpack.c.l.b16 %v500
    %v533 = vunpack.c.l.b16 %v501
    %v534 = vunpack.c.l.b16 %v502
    %v535 = vunpack.c.l.b16 %v503
    %v536 = vunpack.c.l.b16 %v504
    %v537 = vunpack.c.l.b16 %v505
    %v538 = vunpack.c.l.b16 %v506
    %v539 = vunpack.c.l.b16 %v507
    %v540 = vunpack.c.l.b16 %v508
    %v541 = vunpack.c.l.b16 %v509
    %v542 = vunpack.c.l.b16 %v510
    %v543 = vpack.c.b16 %v528, %v527
    %v544 = vpack.c.b16 %v530, %v529
    %v545 = vpack.c.b16 %v532, %v531
    %v546 = vpack.c.b16 %v534, %v533
    %v547 = vpack.c.b16 %v536, %v535
    %v548 = vpack.c.b16 %v538, %v537
    %v549 = vpack.c.b16 %v540, %v539
    %v550 = vpack.c.b16 %v542, %v541
    %559 = vmatprep.subr.bf16.mxu0 0
    %560 = vmatpush1.bf16.msra.mxu0 %v550
    %561 = vmatprep.subr.bf16.mxu0 0
    %562 = vmatpush1.bf16.msra.mxu0 %v549
    %563 = vmatprep.subr.bf16.mxu0 0
    %564 = vmatpush1.bf16.msra.mxu0 %v548
    %565 = vmatprep.subr.bf16.mxu0 0
    %566 = vmatpush1.bf16.msra.mxu0 %v547
    %567 = vmatprep.subr.bf16.mxu0 0
    %568 = vmatpush1.bf16.msra.mxu0 %v546
    %569 = vmatprep.subr.bf16.mxu0 0
    %570 = vmatpush1.bf16.msra.mxu0 %v545
    %571 = vmatprep.subr.bf16.mxu0 0
    %572 = vmatpush1.bf16.msra.mxu0 %v544
    %573 = vmatprep.subr.bf16.mxu0 0
    %574 = vmatpush1.bf16.msra.mxu0 %v543
    %575 = vmatprep.subr.bf16.mxu0 0
    %576 = vmatpush2.bf16.msra.mxu0 0
    %577 = vmatprep.subr.bf16.mxu0 0
    %578 = vmatpush2.bf16.msra.mxu0 0
    %579 = vmatprep.subr.bf16.mxu0 0
    %580 = vmatpush2.bf16.msra.mxu0 0
    %581 = vmatprep.subr.bf16.mxu0 0
    %582 = vmatpush2.bf16.msra.mxu0 0
    %583 = vmatprep.subr.bf16.mxu0 0
    %584 = vmatpush2.bf16.msra.mxu0 0
    %585 = vmatprep.subr.bf16.mxu0 0
    %586 = vmatpush2.bf16.msra.mxu0 0
    %587 = vmatprep.subr.bf16.mxu0 0
    %588 = vmatpush2.bf16.msra.mxu0 0
    %589 = vmatprep.subr.bf16.mxu0 0
    %590 = vmatpush2.bf16.msra.mxu0 0
    %591 = vmatprep.mubr.bf16.mxu0 0
    %592 = vmatmul.mubr.bf16.gmra.mxu0 %v494
    %v593 = vpop.f32.mrf.mxu0
    %v594 = vadd.f32 0.0, %v593
    %v595 = vpop.f32.mrf.mxu0
    %v596 = vpop.f32.mrf.mxu0
    %v597 = vpop.f32.mrf.mxu0
    %598 = vdwg.mxu0
    %v599 = vpack.c.bf16 %v594, %v594
    %v601 = vsel %vm220, %v599, 0
    %603 = vmatprep.subr.bf16.mxu0 0
    %604 = vmatpush1.bf16.msra.mxu0 0
    %605 = vmatprep.subr.bf16.mxu0 0
    %606 = vmatpush1.bf16.msra.mxu0 0
    %607 = vmatprep.subr.bf16.mxu0 0
    %608 = vmatpush1.bf16.msra.mxu0 0
    %609 = vmatprep.subr.bf16.mxu0 0
    %610 = vmatpush1.bf16.msra.mxu0 0
    %611 = vmatprep.subr.bf16.mxu0 0
    %612 = vmatpush1.bf16.msra.mxu0 0
    %613 = vmatprep.subr.bf16.mxu0 0
    %614 = vmatpush1.bf16.msra.mxu0 0
    %615 = vmatprep.subr.bf16.mxu0 0
    %616 = vmatpush1.bf16.msra.mxu0 0
    %617 = vmatprep.subr.bf16.mxu0 0
    %618 = vmatpush1.bf16.msra.mxu0 %v601
    %619 = vmatprep.subr.bf16.mxu0 0
    %620 = vmatpush2.bf16.msra.mxu0 0
    %621 = vmatprep.subr.bf16.mxu0 0
    %622 = vmatpush2.bf16.msra.mxu0 0
    %623 = vmatprep.subr.bf16.mxu0 0
    %624 = vmatpush2.bf16.msra.mxu0 0
    %625 = vmatprep.subr.bf16.mxu0 0
    %626 = vmatpush2.bf16.msra.mxu0 0
    %627 = vmatprep.subr.bf16.mxu0 0
    %628 = vmatpush2.bf16.msra.mxu0 0
    %629 = vmatprep.subr.bf16.mxu0 0
    %630 = vmatpush2.bf16.msra.mxu0 0
    %631 = vmatprep.subr.bf16.mxu0 0
    %632 = vmatpush2.bf16.msra.mxu0 0
    %633 = vmatprep.subr.bf16.mxu0 0
    %634 = vmatpush2.bf16.msra.mxu0 0
    %635 = vmatprep.mubr.bf16.mxu0 0
    %636 = vmatmul.mubr.bf16.gmra.mxu0 %v218
    %v637 = vpop.f32.mrf.mxu0
    %v638 = vadd.f32 0.0, %v637
    %v639 = vpop.f32.mrf.mxu0
    %v640 = vpop.f32.mrf.mxu0
    %v641 = vpop.f32.mrf.mxu0
    %642 = vdwg.mxu0
    %v643 = vmul.f32 %v267, %v638
    %v644 = vld [vmem:[%s11] sm:$0xf]
    %v646 = vsel %vm220, %v644, 0
    %648 = vmatprep.subr.bf16.mxu0 0
    %649 = vmatpush1.bf16.msra.mxu0 0
    %650 = vmatprep.subr.bf16.mxu0 0
    %651 = vmatpush1.bf16.msra.mxu0 0
    %652 = vmatprep.subr.bf16.mxu0 0
    %653 = vmatpush1.bf16.msra.mxu0 0
    %654 = vmatprep.subr.bf16.mxu0 0
    %655 = vmatpush1.bf16.msra.mxu0 0
    %656 = vmatprep.subr.bf16.mxu0 0
    %657 = vmatpush1.bf16.msra.mxu0 0
    %658 = vmatprep.subr.bf16.mxu0 0
    %659 = vmatpush1.bf16.msra.mxu0 0
    %660 = vmatprep.subr.bf16.mxu0 0
    %661 = vmatpush1.bf16.msra.mxu0 0
    %662 = vmatprep.subr.bf16.mxu0 0
    %663 = vmatpush1.bf16.msra.mxu0 %v646
    %664 = vmatprep.subr.bf16.mxu0 0
    %665 = vmatpush2.bf16.msra.mxu0 0
    %666 = vmatprep.subr.bf16.mxu0 0
    %667 = vmatpush2.bf16.msra.mxu0 0
    %668 = vmatprep.subr.bf16.mxu0 0
    %669 = vmatpush2.bf16.msra.mxu0 0
    %670 = vmatprep.subr.bf16.mxu0 0
    %671 = vmatpush2.bf16.msra.mxu0 0
    %672 = vmatprep.subr.bf16.mxu0 0
    %673 = vmatpush2.bf16.msra.mxu0 0
    %674 = vmatprep.subr.bf16.mxu0 0
    %675 = vmatpush2.bf16.msra.mxu0 0
    %676 = vmatprep.subr.bf16.mxu0 0
    %677 = vmatpush2.bf16.msra.mxu0 0
    %678 = vmatprep.subr.bf16.mxu0 0
    %679 = vmatpush2.bf16.msra.mxu0 0
    %680 = vmatprep.mubr.bf16.mxu0 0
    %681 = vmatmul.mubr.bf16.gmra.mxu0 %v272
    %v682 = vpop.f32.mrf.mxu0
    %v683 = vadd.f32 0.0, %v682
    %v684 = vpop.f32.mrf.mxu0
    %v685 = vpop.f32.mrf.mxu0
    %v686 = vpop.f32.mrf.mxu0
    %687 = vdwg.mxu0
    %v688 = vadd.f32 %v643, %v683
    %v689 = vld [vmem:[%s12] sm:$0x1]
    %v691 = vlaneseq
    %v692 = vshrl.u32 %v691, 7
    %v693 = vsub.s32 0, %v692
    %v694 = vrot.slane %v689, %v693
    %v696 = vmul.f32 %v322, %v694
    %v697 = vadd.f32 %v688, %v696
    %v698 = vld [vmem:[#allocation13] sm:$0xf]
    %v699 = vld [vmem:[#allocation13 + $0x4] sm:$0xf]
    %v700 = vld [vmem:[#allocation13 + $0x8] sm:$0xf]
    %v701 = vld [vmem:[#allocation13 + $0xc] sm:$0xf]
    %v702 = vld [vmem:[#allocation13 + $0x10] sm:$0xf]
    %v703 = vld [vmem:[#allocation13 + $0x14] sm:$0xf]
    %v704 = vld [vmem:[#allocation13 + $0x18] sm:$0xf]
    %v705 = vld [vmem:[#allocation13 + $0x1c] sm:$0xf]
    %v706 = vld [vmem:[#allocation13 + $0x20] sm:$0xf]
    %v707 = vld [vmem:[#allocation13 + $0x24] sm:$0xf]
    %v708 = vld [vmem:[#allocation13 + $0x28] sm:$0xf]
    %v709 = vld [vmem:[#allocation13 + $0x2c] sm:$0xf]
    %v710 = vld [vmem:[#allocation13 + $0x30] sm:$0xf]
    %v711 = vld [vmem:[#allocation13 + $0x34] sm:$0xf]
    %v712 = vld [vmem:[#allocation13 + $0x38] sm:$0xf]
    %v713 = vld [vmem:[#allocation13 + $0x3c] sm:$0xf]
    %v714 = vpack.c.bf16 %v697, %v697
    %v715 = vld [vmem:[#allocation14] sm:$0xf]
    %v716 = vld [vmem:[#allocation14 + $0x4] sm:$0xf]
    %v717 = vld [vmem:[#allocation14 + $0x8] sm:$0xf]
    %v718 = vld [vmem:[#allocation14 + $0xc] sm:$0xf]
    %v719 = vld [vmem:[#allocation14 + $0x10] sm:$0xf]
    %v720 = vld [vmem:[#allocation14 + $0x14] sm:$0xf]
    %v721 = vld [vmem:[#allocation14 + $0x18] sm:$0xf]
    %v722 = vld [vmem:[#allocation14 + $0x1c] sm:$0xf]
    %v723 = vld [vmem:[#allocation14 + $0x20] sm:$0xf]
    %v724 = vld [vmem:[#allocation14 + $0x24] sm:$0xf]
    %v725 = vld [vmem:[#allocation14 + $0x28] sm:$0xf]
    %v726 = vld [vmem:[#allocation14 + $0x2c] sm:$0xf]
    %v727 = vld [vmem:[#allocation14 + $0x30] sm:$0xf]
    %v728 = vld [vmem:[#allocation14 + $0x34] sm:$0xf]
    %v729 = vld [vmem:[#allocation14 + $0x38] sm:$0xf]
    %v730 = vld [vmem:[#allocation14 + $0x3c] sm:$0xf]
    %v747 = vunpack.c.l.b16 %v715
    %v748 = vunpack.c.l.b16 %v716
    %v749 = vunpack.c.l.b16 %v717
    %v750 = vunpack.c.l.b16 %v718
    %v751 = vunpack.c.l.b16 %v719
    %v752 = vunpack.c.l.b16 %v720
    %v753 = vunpack.c.l.b16 %v721
    %v754 = vunpack.c.l.b16 %v722
    %v755 = vunpack.c.l.b16 %v723
    %v756 = vunpack.c.l.b16 %v724
    %v757 = vunpack.c.l.b16 %v725
    %v758 = vunpack.c.l.b16 %v726
    %v759 = vunpack.c.l.b16 %v727
    %v760 = vunpack.c.l.b16 %v728
    %v761 = vunpack.c.l.b16 %v729
    %v762 = vunpack.c.l.b16 %v730
    %v763 = vpack.c.b16 %v748, %v747
    %v764 = vpack.c.b16 %v750, %v749
    %v765 = vpack.c.b16 %v752, %v751
    %v766 = vpack.c.b16 %v754, %v753
    %v767 = vpack.c.b16 %v756, %v755
    %v768 = vpack.c.b16 %v758, %v757
    %v769 = vpack.c.b16 %v760, %v759
    %v770 = vpack.c.b16 %v762, %v761
    %779 = vmatprep.subr.bf16.mxu0 0
    %780 = vmatpush1.bf16.msra.mxu0 %v770
    %781 = vmatprep.subr.bf16.mxu0 0
    %782 = vmatpush1.bf16.msra.mxu0 %v769
    %783 = vmatprep.subr.bf16.mxu0 0
    %784 = vmatpush1.bf16.msra.mxu0 %v768
    %785 = vmatprep.subr.bf16.mxu0 0
    %786 = vmatpush1.bf16.msra.mxu0 %v767
    %787 = vmatprep.subr.bf16.mxu0 0
    %788 = vmatpush1.bf16.msra.mxu0 %v766
    %789 = vmatprep.subr.bf16.mxu0 0
    %790 = vmatpush1.bf16.msra.mxu0 %v765
    %791 = vmatprep.subr.bf16.mxu0 0
    %792 = vmatpush1.bf16.msra.mxu0 %v764
    %793 = vmatprep.subr.bf16.mxu0 0
    %794 = vmatpush1.bf16.msra.mxu0 %v763
    %795 = vmatprep.subr.bf16.mxu0 0
    %796 = vmatpush2.bf16.msra.mxu0 0
    %797 = vmatprep.subr.bf16.mxu0 0
    %798 = vmatpush2.bf16.msra.mxu0 0
    %799 = vmatprep.subr.bf16.mxu0 0
    %800 = vmatpush2.bf16.msra.mxu0 0
    %801 = vmatprep.subr.bf16.mxu0 0
    %802 = vmatpush2.bf16.msra.mxu0 0
    %803 = vmatprep.subr.bf16.mxu0 0
    %804 = vmatpush2.bf16.msra.mxu0 0
    %805 = vmatprep.subr.bf16.mxu0 0
    %806 = vmatpush2.bf16.msra.mxu0 0
    %807 = vmatprep.subr.bf16.mxu0 0
    %808 = vmatpush2.bf16.msra.mxu0 0
    %809 = vmatprep.subr.bf16.mxu0 0
    %810 = vmatpush2.bf16.msra.mxu0 0
    %811 = vmatprep.mubr.bf16.mxu0 0
    %812 = vmatmul.mubr.bf16.gmra.mxu0 %v714
    %v813 = vpop.f32.mrf.mxu0
    %v814 = vadd.f32 0.0, %v813
    %v815 = vpop.f32.mrf.mxu0
    %v816 = vpop.f32.mrf.mxu0
    %v817 = vpop.f32.mrf.mxu0
    %818 = vdwg.mxu0
    %v835 = vunpack.c.l.b16 %v698
    %v836 = vunpack.c.l.b16 %v699
    %v837 = vunpack.c.l.b16 %v700
    %v838 = vunpack.c.l.b16 %v701
    %v839 = vunpack.c.l.b16 %v702
    %v840 = vunpack.c.l.b16 %v703
    %v841 = vunpack.c.l.b16 %v704
    %v842 = vunpack.c.l.b16 %v705
    %v843 = vunpack.c.l.b16 %v706
    %v844 = vunpack.c.l.b16 %v707
    %v845 = vunpack.c.l.b16 %v708
    %v846 = vunpack.c.l.b16 %v709
    %v847 = vunpack.c.l.b16 %v710
    %v848 = vunpack.c.l.b16 %v711
    %v849 = vunpack.c.l.b16 %v712
    %v850 = vunpack.c.l.b16 %v713
    %v851 = vpack.c.b16 %v836, %v835
    %v852 = vpack.c.b16 %v838, %v837
    %v853 = vpack.c.b16 %v840, %v839
    %v854 = vpack.c.b16 %v842, %v841
    %v855 = vpack.c.b16 %v844, %v843
    %v856 = vpack.c.b16 %v846, %v845
    %v857 = vpack.c.b16 %v848, %v847
    %v858 = vpack.c.b16 %v850, %v849
    %867 = vmatprep.subr.bf16.mxu0 0
    %868 = vmatpush1.bf16.msra.mxu0 %v858
    %869 = vmatprep.subr.bf16.mxu0 0
    %870 = vmatpush1.bf16.msra.mxu0 %v857
    %871 = vmatprep.subr.bf16.mxu0 0
    %872 = vmatpush1.bf16.msra.mxu0 %v856
    %873 = vmatprep.subr.bf16.mxu0 0
    %874 = vmatpush1.bf16.msra.mxu0 %v855
    %875 = vmatprep.subr.bf16.mxu0 0
    %876 = vmatpush1.bf16.msra.mxu0 %v854
    %877 = vmatprep.subr.bf16.mxu0 0
    %878 = vmatpush1.bf16.msra.mxu0 %v853
    %879 = vmatprep.subr.bf16.mxu0 0
    %880 = vmatpush1.bf16.msra.mxu0 %v852
    %881 = vmatprep.subr.bf16.mxu0 0
    %882 = vmatpush1.bf16.msra.mxu0 %v851
    %883 = vmatprep.subr.bf16.mxu0 0
    %884 = vmatpush2.bf16.msra.mxu0 0
    %885 = vmatprep.subr.bf16.mxu0 0
    %886 = vmatpush2.bf16.msra.mxu0 0
    %887 = vmatprep.subr.bf16.mxu0 0
    %888 = vmatpush2.bf16.msra.mxu0 0
    %889 = vmatprep.subr.bf16.mxu0 0
    %890 = vmatpush2.bf16.msra.mxu0 0
    %891 = vmatprep.subr.bf16.mxu0 0
    %892 = vmatpush2.bf16.msra.mxu0 0
    %893 = vmatprep.subr.bf16.mxu0 0
    %894 = vmatpush2.bf16.msra.mxu0 0
    %895 = vmatprep.subr.bf16.mxu0 0
    %896 = vmatpush2.bf16.msra.mxu0 0
    %897 = vmatprep.subr.bf16.mxu0 0
    %898 = vmatpush2.bf16.msra.mxu0 0
    %899 = vmatprep.mubr.bf16.mxu0 0
    %900 = vmatmul.mubr.bf16.gmra.mxu0 %v494
    %v901 = vpop.f32.mrf.mxu0
    %v902 = vadd.f32 %v814, %v901
    %v903 = vpop.f32.mrf.mxu0
    %v904 = vpop.f32.mrf.mxu0
    %v905 = vpop.f32.mrf.mxu0
    %906 = vdwg.mxu0
    %v907 = vld [vmem:[%s15] sm:$0x1]
    %v909 = vlaneseq
    %v910 = vshrl.u32 %v909, 7
    %v911 = vsub.s32 0, %v910
    %v912 = vrot.slane %v907, %v911
    %v914 = vadd.f32 %v902, %v912
    %v915 = vmax.f32 %v914, 0.0
    %916 = vst [vmem:[#allocation16] sm:$0xff] %v915
    // Predicated region
    $region98: #{tpu_custom_call.1} parent=1 // pred_check
      _
    $region99: #{tpu_custom_call.1} parent=1 // pred_check_branch
      %918 = sbr.rel (0) target = $region101
    $region100: #{tpu_custom_call.1} parent=1 // pred_region
      %s920 = ssub.s32 128, 128
      %921 = vsyncadd [#allocation4], %s920
      %s923 = sshll.u32 [#allocation16], 4
      %s924 = int_to_ptr.vmem [resolvable:$true] %s923
      %926 = dma.vmem_to_hbm [thread:$0]  %s924, 128, %s16, [#allocation4]
    $region101: #{tpu_custom_call.1} parent=1 // pred_fallthru
      _
    // Predicated region
    $region102: #{tpu_custom_call.1} parent=1 // pred_check
      _
    $region103: #{tpu_custom_call.1} parent=1 // pred_check_branch
      %928 = sbr.rel (0) target = $region105
    $region104: #{tpu_custom_call.1} parent=1 // pred_region
      %929 = dma.done [#allocation4], 128
    $region105: #{tpu_custom_call.1} parent=1 // pred_fallthru
      _
    %930 = vsyncpa [#allocation3], 1
    %931 = vsyncpa [#allocation6], 1
    %932 = vsyncpa [#allocation9], 1
    %933 = vsyncpa [#allocation12], 1
    %934 = vsyncpa [#allocation15], 1
    %935 = vsyncpa [#allocation4], 1

</llo_original>
